<compile_context>
chip_gen: v5e
topology: v5e:2x2
jax: 0.10.0
libtpu: 0.0.40
codegen_flags: <defaults>
</compile_context>

<pallas_src>
import functools
import math

import jax
import jax.numpy as jnp
from jax.experimental import pallas as pl
from jax.experimental.pallas import tpu as pltpu

LN_EPS = 1e-12


def _cross_attn_body(x_ref, ctx_ref, mask_ref, wq_ref, wkv_ref, wo_ref, vec_ref,
                     out_ref, kv_ref, *, num_heads, head_dim, nb, tq):
    H = num_heads * head_dim
    Sc = ctx_ref.shape[1]

    bq = vec_ref[0:1, :]        # already pre-scaled by 1/sqrt(head_dim)
    bk = vec_ref[1:2, :]
    bv = vec_ref[2:3, :]
    bo = vec_ref[3:4, :]
    gamma = vec_ref[4:5, :]
    beta = vec_ref[5:6, :]

    # ---- K/V projection: computed once per batch block (first row tile), reused ----
    @pl.when(pl.program_id(1) == 0)
    def _():
        wkv = wkv_ref[...]                                   # (C, 2H) bf16
        bkv = jnp.concatenate([bk, bv], axis=1)              # (1, 2H) f32
        for b in range(nb):
            ctx_b = ctx_ref[b].astype(jnp.bfloat16)          # (Sc, C)
            kvb = jnp.dot(ctx_b, wkv, preferred_element_type=jnp.float32)  # (Sc, 2H)
            kv_ref[b] = (kvb + bkv).astype(jnp.bfloat16)

    # ---- Q projection (scale folded into Wq/bq by the wrapper) ----
    xf = x_ref[...].reshape(nb * tq, H)                      # f32, kept for residual
    q = (jnp.dot(xf.astype(jnp.bfloat16), wq_ref[...],
                 preferred_element_type=jnp.float32) + bq).astype(jnp.bfloat16)

    # ---- attention per (batch-row, head); heads concatenated, single Wo matmul after ----
    parts = []
    for b in range(nb):
        q_b = q[b * tq:(b + 1) * tq, :]                      # (tq, H) bf16
        kv_b = kv_ref[b]                                     # (Sc, 2H) bf16
        if mask_ref is not None:
            m_b = jnp.broadcast_to(mask_ref[b], (tq, Sc)).astype(jnp.float32)
        heads = []
        for h in range(num_heads):
            lo = h * head_dim
            hi = lo + head_dim
            # scores = q_h @ k_h^T  (contract on head_dim, no explicit transpose)
            s = jax.lax.dot_general(q_b[:, lo:hi], kv_b[:, lo:hi],
                                    (((1,), (1,)), ((), ())),
                                    preferred_element_type=jnp.float32)   # (tq, Sc)
            if mask_ref is not None:
                s = s + m_b
            s = s - jnp.max(s, axis=-1, keepdims=True)
            p = jnp.exp(s)
            inv_l = pl.reciprocal(jnp.sum(p, axis=-1, keepdims=True), approx=True)
            c_h = jnp.dot(p.astype(jnp.bfloat16), kv_b[:, H + lo:H + hi],
                          preferred_element_type=jnp.float32) * inv_l     # (tq, dH)
            heads.append(c_h)
        parts.append(jnp.concatenate(heads, axis=1))                      # (tq, H)
    attn = parts[0] if nb == 1 else jnp.concatenate(parts, axis=0)        # (nb*tq, H)

    # ---- BertAttOutput: dense + bias + residual + LayerNorm (dropout = identity) ----
    proj = jnp.dot(attn.astype(jnp.bfloat16), wo_ref[...],
                   preferred_element_type=jnp.float32)                    # (nb*tq, H)
    y = proj + bo + xf
    mean = jnp.mean(y, axis=-1, keepdims=True)
    c = y - mean
    var = jnp.mean(c * c, axis=-1, keepdims=True)
    out = c * jax.lax.rsqrt(var + LN_EPS) * gamma + beta
    out_ref[...] = out.reshape(nb, tq, H).astype(out_ref.dtype)


def _kernel_with_mask(x_ref, ctx_ref, mask_ref, wq_ref, wkv_ref, wo_ref, vec_ref,
                      out_ref, kv_ref, *, num_heads, head_dim, nb, tq):
    _cross_attn_body(x_ref, ctx_ref, mask_ref, wq_ref, wkv_ref, wo_ref, vec_ref,
                     out_ref, kv_ref, num_heads=num_heads, head_dim=head_dim,
                     nb=nb, tq=tq)


def _kernel_no_mask(x_ref, ctx_ref, wq_ref, wkv_ref, wo_ref, vec_ref,
                    out_ref, kv_ref, *, num_heads, head_dim, nb, tq):
    _cross_attn_body(x_ref, ctx_ref, None, wq_ref, wkv_ref, wo_ref, vec_ref,
                     out_ref, kv_ref, num_heads=num_heads, head_dim=head_dim,
                     nb=nb, tq=tq)


def _round_up(x, m):
    return ((x + m - 1) // m) * m


def bert_crossatt_layer(input_tensor, ctx_tensor, params, ctx_att_mask=None, *,
                        num_heads, tq=256, batch_block=None):
    """Fused cross-attention + output (dense + residual + LayerNorm).

    params (Linear weights pre-transposed to [in, out]):
      wq [H,H], wk [C,H], wv [C,H], wo [H,H];  bq, bk, bv, bo, gamma, beta: [H]
    ctx_att_mask: optional additive mask [B, Sc] or BERT extended [B,1,1,Sc]
                  (values 0 / -10000).
    """
    B, Sq, H = input_tensor.shape
    Bc, Sc, C = ctx_tensor.shape
    assert Bc == B
    assert H % num_heads == 0
    head_dim = H // num_heads
    dtype = input_tensor.dtype
    scale = 1.0 / math.sqrt(head_dim)

    # bf16 weights for the MXU (f32 accumulation in-kernel); scale folded into Wq/bq.
    wq = (params["wq"] * scale).astype(jnp.bfloat16)
    wkv = jnp.concatenate([params["wk"], params["wv"]], axis=1).astype(jnp.bfloat16)
    wo = params["wo"].astype(jnp.bfloat16)
    zeros = jnp.zeros((H,), jnp.float32)
    vecs = jnp.stack([params["bq"] * scale, params["bk"], params["bv"], params["bo"],
                      params["gamma"], params["beta"], zeros, zeros],
                     axis=0).astype(jnp.float32)

    # ---- query-row tiling with remainder handling ----
    tq_eff = min(_round_up(tq, 8), _round_up(Sq, 8))
    sq_pad = _round_up(Sq, tq_eff)
    n_q = sq_pad // tq_eff

    # ---- batch blocking: raise matmul M when Sq is small, but keep >=2 steps on the
    #      parallel batch axis when B allows (v7x: 2 TensorCores) ----
    if batch_block is None:
        nb = max(1, min(B, 256 // tq_eff))
        if B > 1:
            nb = min(nb, (B + 1) // 2)
    else:
        nb = max(1, min(batch_block, B))
    b_pad = _round_up(B, nb)

    x = input_tensor.astype(jnp.float32)
    ctx = ctx_tensor.astype(jnp.float32)
    if sq_pad != Sq:
        x = jnp.pad(x, ((0, 0), (0, sq_pad - Sq), (0, 0)))
    if b_pad != B:
        x = jnp.pad(x, ((0, b_pad - B), (0, 0), (0, 0)))
        ctx = jnp.pad(ctx, ((0, b_pad - B), (0, 0), (0, 0)))

    use_mask = ctx_att_mask is not None
    if use_mask:
        m = ctx_att_mask
        if m.ndim == 4:
            # BERT "extended" additive mask (B,1,1,Sc); reject query-dependent masks.
            assert m.shape[1] == 1 and m.shape[2] == 1, f"unsupported mask shape {m.shape}"
            m = m.reshape(B, Sc)
        assert m.shape == (B, Sc), f"unsupported mask shape {m.shape}"
        mask3 = m.reshape(B, 1, Sc).astype(jnp.float32)
        if b_pad != B:
            mask3 = jnp.pad(mask3, ((0, b_pad - B), (0, 0), (0, 0)))

    grid = (b_pad // nb, n_q)

    x_spec = pl.BlockSpec((nb, tq_eff, H), lambda bb, i: (bb, i, 0))
    ctx_spec = pl.BlockSpec((nb, Sc, C), lambda bb, i: (bb, 0, 0))
    mask_spec = pl.BlockSpec((nb, 1, Sc), lambda bb, i: (bb, 0, 0))
    # weights / bias slab: fully resident in VMEM, single-buffered (no per-step DMA)
    w_vmem = pl.BlockSpec(memory_space=pltpu.MemorySpace.VMEM)
    out_spec = pl.BlockSpec((nb, tq_eff, H), lambda bb, i: (bb, i, 0))

    if use_mask:
        kernel = functools.partial(_kernel_with_mask, num_heads=num_heads,
                                   head_dim=head_dim, nb=nb, tq=tq_eff)
        in_specs = [x_spec, ctx_spec, mask_spec, w_vmem, w_vmem, w_vmem, w_vmem]
        args = (x, ctx, mask3, wq, wkv, wo, vecs)
    else:
        kernel = functools.partial(_kernel_no_mask, num_heads=num_heads,
                                   head_dim=head_dim, nb=nb, tq=tq_eff)
        in_specs = [x_spec, ctx_spec, w_vmem, w_vmem, w_vmem, w_vmem]
        args = (x, ctx, wq, wkv, wo, vecs)

    # ---- VMEM budget (bf16 weights resident + double-buffered activation tiles) ----
    weights_b = 2 * (H * H + C * 2 * H + H * H) + 4 * 8 * H
    io_b = 4 * (2 * 2 * nb * tq_eff * H + 2 * nb * Sc * C
                + (2 * nb * Sc if use_mask else 0))
    scratch_b = 2 * nb * Sc * 2 * H
    temps_b = 4 * (3 * nb * tq_eff * H + 4 * tq_eff * Sc) + 4 * nb * Sc * 2 * H
    vmem_limit = int(min(max(2 * (weights_b + io_b + scratch_b + temps_b) + (2 << 20),
                             24 << 20), 64 << 20))

    flops = 2 * b_pad * (sq_pad * H * H            # Q projection
                         + Sc * C * 2 * H          # fused K/V projection (once per batch)
                         + 2 * sq_pad * Sc * H     # scores + probs @ V
                         + sq_pad * H * H)         # output projection
    bytes_accessed = (4 * b_pad * (2 * sq_pad * H + Sc * C)
                      + 2 * (2 * H * H + 2 * C * H) + 4 * 8 * H
                      + (4 * b_pad * Sc if use_mask else 0))
    cost = pl.CostEstimate(flops=flops,
                           transcendentals=b_pad * sq_pad * Sc * num_heads,
                           bytes_accessed=bytes_accessed)

    out = pl.pallas_call(
        kernel,
        out_shape=jax.ShapeDtypeStruct((b_pad, sq_pad, H), dtype),
        grid_spec=pltpu.PrefetchScalarGridSpec(
            num_scalar_prefetch=0,
            grid=grid,
            in_specs=in_specs,
            out_specs=out_spec,
            scratch_shapes=[pltpu.VMEM((nb, Sc, 2 * H), jnp.bfloat16)],
        ),
        compiler_params=pltpu.CompilerParams(
            dimension_semantics=("parallel", "arbitrary"),
            vmem_limit_bytes=vmem_limit),
        cost_estimate=cost,
    )(*args)

    if b_pad != B or sq_pad != Sq:
        out = out[:B, :Sq, :]
    return out


def _reference(x, ctx, params, mask, num_heads):
    B, Sq, H = x.shape
    dH = H // num_heads
    P = jax.lax.Precision.HIGHEST
    q = jnp.matmul(x, params["wq"], precision=P) + params["bq"]
    k = jnp.matmul(ctx, params["wk"], precision=P) + params["bk"]
    v = jnp.matmul(ctx, params["wv"], precision=P) + params["bv"]

    def split(t):
        b, s, _ = t.shape
        return t.reshape(b, s, num_heads, dH).transpose(0, 2, 1, 3)

    qh, kh, vh = split(q), split(k), split(v)
    s = jnp.einsum("bhqd,bhkd->bhqk", qh, kh, precision=P) / math.sqrt(dH)
    if mask is not None:
        s = s + mask[:, None, None, :]
    p = jax.nn.softmax(s, axis=-1)
    c = jnp.einsum("bhqk,bhkd->bhqd", p, vh, precision=P)
    c = c.transpose(0, 2, 1, 3).reshape(B, Sq, H)
    o = jnp.matmul(c, params["wo"], precision=P) + params["bo"] + x
    mean = o.mean(-1, keepdims=True)
    var = ((o - mean) ** 2).mean(-1, keepdims=True)
    return (o - mean) / jnp.sqrt(var + LN_EPS) * params["gamma"] + params["beta"]


if __name__ == "__main__":
    # Small shapes consistent with the module: hidden=128, 4 heads, query seq 8, ctx seq 16.
    B, SQ, SC, HID, HEADS = 2, 8, 16, 128, 4

    key = jax.random.PRNGKey(0)
    ks = jax.random.split(key, 12)
    params = {
        "wq": 0.05 * jax.random.normal(ks[0], (HID, HID), jnp.float32),
        "bq": 0.05 * jax.random.normal(ks[1], (HID,), jnp.float32),
        "wk": 0.05 * jax.random.normal(ks[2], (HID, HID), jnp.float32),
        "bk": 0.05 * jax.random.normal(ks[3], (HID,), jnp.float32),
        "wv": 0.05 * jax.random.normal(ks[4], (HID, HID), jnp.float32),
        "bv": 0.05 * jax.random.normal(ks[5], (HID,), jnp.float32),
        "wo": 0.05 * jax.random.normal(ks[6], (HID, HID), jnp.float32),
        "bo": 0.05 * jax.random.normal(ks[7], (HID,), jnp.float32),
        "gamma": 1.0 + 0.1 * jax.random.normal(ks[8], (HID,), jnp.float32),
        "beta": 0.1 * jax.random.normal(ks[9], (HID,), jnp.float32),
    }
    x = jax.random.normal(ks[10], (B, SQ, HID), jnp.float32)
    ctx = jax.random.normal(ks[11], (B, SC, HID), jnp.float32)

    # BERT-style additive ctx mask: hide the last 3 ctx tokens of batch 1
    mask = jnp.zeros((B, SC), jnp.float32)
    mask = mask.at[1, SC - 3:].set(-10000.0)

    # bf16 MXU operands -> compare against the f32 reference at bf16-appropriate tolerance
    TOL = dict(atol=2e-2, rtol=2e-2)

    # masked path
    out = jax.block_until_ready(bert_crossatt_layer(x, ctx, params, mask, num_heads=HEADS))
    ref = _reference(x, ctx, params, mask, HEADS)
    assert out.shape == (B, SQ, HID)
    assert jnp.allclose(out, ref, **TOL), float(jnp.max(jnp.abs(out - ref)))

    # no-mask path
    out2 = jax.block_until_ready(bert_crossatt_layer(x, ctx, params, None, num_heads=HEADS))
    ref2 = _reference(x, ctx, params, None, HEADS)
    assert jnp.allclose(out2, ref2, **TOL), float(jnp.max(jnp.abs(out2 - ref2)))

    print("KERNEL_OK")
</pallas_src>

<mosaic_0001>
module attributes {stable_mosaic.version = 11 : i64} {
  func.func @_kernel_with_mask(%arg0: i32, %arg1: i32, %arg2: memref<1x8x128xf32, #tpu.memory_space<vmem>>, %arg3: memref<1x16x128xf32, #tpu.memory_space<vmem>>, %arg4: memref<1x1x16xf32, #tpu.memory_space<vmem>>, %arg5: memref<128x128xbf16, #tpu.memory_space<vmem>>, %arg6: memref<128x256xbf16, #tpu.memory_space<vmem>>, %arg7: memref<128x128xbf16, #tpu.memory_space<vmem>>, %arg8: memref<8x128xf32, #tpu.memory_space<vmem>>, %arg9: memref<1x8x128xf32, #tpu.memory_space<vmem>>, %arg10: memref<1x16x256xbf16, #tpu.memory_space<vmem>>) attributes {dimension_semantics = [#tpu.dimension_semantics<parallel>, #tpu.dimension_semantics<arbitrary>], iteration_bounds = array<i64: 2, 1>, scalar_prefetch = 0 : i64, scratch_operands = 1 : i64, tpu.core_type = #tpu.core_type<tc>, window_params = [{transform_indices = @transform_0, window_bounds = array<i64: 1, 8, 128>}, {transform_indices = @transform_1, window_bounds = array<i64: 1, 16, 128>}, {transform_indices = @transform_2, window_bounds = array<i64: 1, 1, 16>}, {pipeline_mode = #tpu.pipeline_mode<synchronous>, transform_indices = @transform_3, window_bounds = array<i64: 128, 128>}, {pipeline_mode = #tpu.pipeline_mode<synchronous>, transform_indices = @transform_4, window_bounds = array<i64: 128, 256>}, {pipeline_mode = #tpu.pipeline_mode<synchronous>, transform_indices = @transform_5, window_bounds = array<i64: 128, 128>}, {pipeline_mode = #tpu.pipeline_mode<synchronous>, transform_indices = @transform_6, window_bounds = array<i64: 8, 128>}, {transform_indices = @transform_7, window_bounds = array<i64: 1, 8, 128>}]} {
    %c0 = arith.constant 0 : index
    %c0_0 = arith.constant 0 : index
    %0 = vector.load %arg8[%c0, %c0_0] : memref<8x128xf32, #tpu.memory_space<vmem>>, vector<1x128xf32>
    %c1 = arith.constant 1 : index
    %c0_1 = arith.constant 0 : index
    %1 = vector.load %arg8[%c1, %c0_1] : memref<8x128xf32, #tpu.memory_space<vmem>>, vector<1x128xf32>
    %c2 = arith.constant 2 : index
    %c0_2 = arith.constant 0 : index
    %2 = vector.load %arg8[%c2, %c0_2] : memref<8x128xf32, #tpu.memory_space<vmem>>, vector<1x128xf32>
    %c3 = arith.constant 3 : index
    %c0_3 = arith.constant 0 : index
    %3 = vector.load %arg8[%c3, %c0_3] : memref<8x128xf32, #tpu.memory_space<vmem>>, vector<1x128xf32>
    %c4 = arith.constant 4 : index
    %c0_4 = arith.constant 0 : index
    %4 = vector.load %arg8[%c4, %c0_4] : memref<8x128xf32, #tpu.memory_space<vmem>>, vector<1x128xf32>
    %c5 = arith.constant 5 : index
    %c0_5 = arith.constant 0 : index
    %5 = vector.load %arg8[%c5, %c0_5] : memref<8x128xf32, #tpu.memory_space<vmem>>, vector<1x128xf32>
    %c0_i32 = arith.constant 0 : i32
    %6 = arith.cmpi eq, %arg1, %c0_i32 : i32
    %7 = arith.extui %6 : i1 to i32
    %c0_i32_6 = arith.constant 0 : i32
    %8 = arith.cmpi ne, %7, %c0_i32_6 : i32
    scf.if %8 {
      %c0_45 = arith.constant 0 : index
      %c0_46 = arith.constant 0 : index
      %120 = vector.load %arg6[%c0_45, %c0_46] : memref<128x256xbf16, #tpu.memory_space<vmem>>, vector<128x256xbf16>
      %121 = tpu.concatenate %1, %2 in 1 : vector<1x128xf32>, vector<1x128xf32> -> vector<1x256xf32>
      %c0_47 = arith.constant 0 : index
      %c0_48 = arith.constant 0 : index
      %c0_49 = arith.constant 0 : index
      %122 = vector.load %arg3[%c0_47, %c0_48, %c0_49] : memref<1x16x128xf32, #tpu.memory_space<vmem>>, vector<1x16x128xf32>
      %123 = vector.shape_cast %122 : vector<1x16x128xf32> to vector<16x128xf32>
      %124 = arith.truncf %123 : vector<16x128xf32> to vector<16x128xbf16>
      %cst_50 = arith.constant dense<0.000000e+00> : vector<16x256xf32>
      %125 = tpu.matmul %124, %120, %cst_50 {dimension_numbers = #tpu.dot_dimension_numbers<[1], [0], [0], [1], [0, 0, 1, 1], [], []>} : vector<16x128xbf16>, vector<128x256xbf16>, vector<16x256xf32> -> vector<16x256xf32>
      %126 = vector.broadcast %121 : vector<1x256xf32> to vector<16x256xf32>
      %127 = arith.addf %125, %126 : vector<16x256xf32>
      %128 = arith.truncf %127 : vector<16x256xf32> to vector<16x256xbf16>
      %c0_51 = arith.constant 0 : index
      %c0_52 = arith.constant 0 : index
      %c0_53 = arith.constant 0 : index
      %129 = vector.load %arg10[%c0_51, %c0_52, %c0_53] : memref<1x16x256xbf16, #tpu.memory_space<vmem>>, vector<1x16x256xbf16>
      %130 = vector.shape_cast %129 : vector<1x16x256xbf16> to vector<16x256xbf16>
      %131 = vector.shape_cast %128 : vector<16x256xbf16> to vector<1x16x256xbf16>
      tpu.vector_store %arg10[%c0_51, %c0_52, %c0_53], %131 {strides = array<i32>} : memref<1x16x256xbf16, #tpu.memory_space<vmem>>, vector<1x16x256xbf16>,
    } else {
    }
    %c0_7 = arith.constant 0 : index
    %c0_8 = arith.constant 0 : index
    %c0_9 = arith.constant 0 : index
    %9 = vector.load %arg2[%c0_7, %c0_8, %c0_9] : memref<1x8x128xf32, #tpu.memory_space<vmem>>, vector<1x8x128xf32>
    %10 = vector.shape_cast %9 : vector<1x8x128xf32> to vector<8x128xf32>
    %11 = arith.truncf %10 : vector<8x128xf32> to vector<8x128xbf16>
    %c0_10 = arith.constant 0 : index
    %c0_11 = arith.constant 0 : index
    %12 = vector.load %arg5[%c0_10, %c0_11] : memref<128x128xbf16, #tpu.memory_space<vmem>>, vector<128x128xbf16>
    %cst = arith.constant dense<0.000000e+00> : vector<8x128xf32>
    %13 = tpu.matmul %11, %12, %cst {dimension_numbers = #tpu.dot_dimension_numbers<[1], [0], [0], [1], [0, 0, 1, 1], [], []>} : vector<8x128xbf16>, vector<128x128xbf16>, vector<8x128xf32> -> vector<8x128xf32>
    %14 = vector.broadcast %0 : vector<1x128xf32> to vector<8x128xf32>
    %15 = arith.addf %13, %14 : vector<8x128xf32>
    %16 = arith.truncf %15 : vector<8x128xf32> to vector<8x128xbf16>
    %c0_12 = arith.constant 0 : index
    %c0_13 = arith.constant 0 : index
    %c0_14 = arith.constant 0 : index
    %17 = vector.load %arg10[%c0_12, %c0_13, %c0_14] : memref<1x16x256xbf16, #tpu.memory_space<vmem>>, vector<1x16x256xbf16>
    %18 = vector.shape_cast %17 : vector<1x16x256xbf16> to vector<16x256xbf16>
    %c0_15 = arith.constant 0 : index
    %c0_16 = arith.constant 0 : index
    %c0_17 = arith.constant 0 : index
    %19 = vector.load %arg4[%c0_15, %c0_16, %c0_17] : memref<1x1x16xf32, #tpu.memory_space<vmem>>, vector<1x1x16xf32>
    %20 = vector.shape_cast %19 : vector<1x1x16xf32> to vector<1x16xf32>
    %21 = vector.shape_cast %20 : vector<1x16xf32> to vector<1x16xf32>
    %22 = vector.broadcast %21 : vector<1x16xf32> to vector<8x16xf32>
    %23 = vector.extract_strided_slice %16 {offsets = [0, 0], sizes = [8, 32], strides = [1, 1]} : vector<8x128xbf16> to vector<8x32xbf16>
    %24 = vector.extract_strided_slice %18 {offsets = [0, 0], sizes = [16, 32], strides = [1, 1]} : vector<16x256xbf16> to vector<16x32xbf16>
    %cst_18 = arith.constant dense<0.000000e+00> : vector<8x16xf32>
    %25 = tpu.matmul %23, %24, %cst_18 {dimension_numbers = #tpu.dot_dimension_numbers<[1], [1], [0], [0], [0, 0, 1, 0], [], []>} : vector<8x32xbf16>, vector<16x32xbf16>, vector<8x16xf32> -> vector<8x16xf32>
    %26 = arith.addf %25, %22 : vector<8x16xf32>
    %cst_19 = arith.constant dense<0xFF800000> : vector<8xf32>
    %27 = vector.multi_reduction <maximumf>, %26, %cst_19 [1] : vector<8x16xf32> to vector<8xf32>
    %28 = vector.shape_cast %27 : vector<8xf32> to vector<8x1xf32>
    %29 = vector.broadcast %28 : vector<8x1xf32> to vector<8x16xf32>
    %30 = arith.subf %26, %29 : vector<8x16xf32>
    %31 = math.exp %30 : vector<8x16xf32>
    %cst_20 = arith.constant dense<0.000000e+00> : vector<8xf32>
    %32 = vector.multi_reduction <add>, %31, %cst_20 [1] : vector<8x16xf32> to vector<8xf32>
    %33 = vector.shape_cast %32 : vector<8xf32> to vector<8x1xf32>
    %34 = tpu.reciprocal %33 {approx = true} : vector<8x1xf32> -> vector<8x1xf32>
    %35 = arith.truncf %31 : vector<8x16xf32> to vector<8x16xbf16>
    %36 = vector.extract_strided_slice %18 {offsets = [0, 128], sizes = [16, 32], strides = [1, 1]} : vector<16x256xbf16> to vector<16x32xbf16>
    %cst_21 = arith.constant dense<0.000000e+00> : vector<8x32xf32>
    %37 = tpu.matmul %35, %36, %cst_21 {dimension_numbers = #tpu.dot_dimension_numbers<[1], [0], [0], [1], [0, 0, 1, 1], [], []>} : vector<8x16xbf16>, vector<16x32xbf16>, vector<8x32xf32> -> vector<8x32xf32>
    %38 = vector.broadcast %34 : vector<8x1xf32> to vector<8x32xf32>
    %39 = arith.mulf %37, %38 : vector<8x32xf32>
    %40 = vector.extract_strided_slice %16 {offsets = [0, 32], sizes = [8, 32], strides = [1, 1]} : vector<8x128xbf16> to vector<8x32xbf16>
    %41 = vector.extract_strided_slice %18 {offsets = [0, 32], sizes = [16, 32], strides = [1, 1]} : vector<16x256xbf16> to vector<16x32xbf16>
    %cst_22 = arith.constant dense<0.000000e+00> : vector<8x16xf32>
    %42 = tpu.matmul %40, %41, %cst_22 {dimension_numbers = #tpu.dot_dimension_numbers<[1], [1], [0], [0], [0, 0, 1, 0], [], []>} : vector<8x32xbf16>, vector<16x32xbf16>, vector<8x16xf32> -> vector<8x16xf32>
    %43 = arith.addf %42, %22 : vector<8x16xf32>
    %cst_23 = arith.constant dense<0xFF800000> : vector<8xf32>
    %44 = vector.multi_reduction <maximumf>, %43, %cst_23 [1] : vector<8x16xf32> to vector<8xf32>
    %45 = vector.shape_cast %44 : vector<8xf32> to vector<8x1xf32>
    %46 = vector.broadcast %45 : vector<8x1xf32> to vector<8x16xf32>
    %47 = arith.subf %43, %46 : vector<8x16xf32>
    %48 = math.exp %47 : vector<8x16xf32>
    %cst_24 = arith.constant dense<0.000000e+00> : vector<8xf32>
    %49 = vector.multi_reduction <add>, %48, %cst_24 [1] : vector<8x16xf32> to vector<8xf32>
    %50 = vector.shape_cast %49 : vector<8xf32> to vector<8x1xf32>
    %51 = tpu.reciprocal %50 {approx = true} : vector<8x1xf32> -> vector<8x1xf32>
    %52 = arith.truncf %48 : vector<8x16xf32> to vector<8x16xbf16>
    %53 = vector.extract_strided_slice %18 {offsets = [0, 160], sizes = [16, 32], strides = [1, 1]} : vector<16x256xbf16> to vector<16x32xbf16>
    %cst_25 = arith.constant dense<0.000000e+00> : vector<8x32xf32>
    %54 = tpu.matmul %52, %53, %cst_25 {dimension_numbers = #tpu.dot_dimension_numbers<[1], [0], [0], [1], [0, 0, 1, 1], [], []>} : vector<8x16xbf16>, vector<16x32xbf16>, vector<8x32xf32> -> vector<8x32xf32>
    %55 = vector.broadcast %51 : vector<8x1xf32> to vector<8x32xf32>
    %56 = arith.mulf %54, %55 : vector<8x32xf32>
    %57 = vector.extract_strided_slice %16 {offsets = [0, 64], sizes = [8, 32], strides = [1, 1]} : vector<8x128xbf16> to vector<8x32xbf16>
    %58 = vector.extract_strided_slice %18 {offsets = [0, 64], sizes = [16, 32], strides = [1, 1]} : vector<16x256xbf16> to vector<16x32xbf16>
    %cst_26 = arith.constant dense<0.000000e+00> : vector<8x16xf32>
    %59 = tpu.matmul %57, %58, %cst_26 {dimension_numbers = #tpu.dot_dimension_numbers<[1], [1], [0], [0], [0, 0, 1, 0], [], []>} : vector<8x32xbf16>, vector<16x32xbf16>, vector<8x16xf32> -> vector<8x16xf32>
    %60 = arith.addf %59, %22 : vector<8x16xf32>
    %cst_27 = arith.constant dense<0xFF800000> : vector<8xf32>
    %61 = vector.multi_reduction <maximumf>, %60, %cst_27 [1] : vector<8x16xf32> to vector<8xf32>
    %62 = vector.shape_cast %61 : vector<8xf32> to vector<8x1xf32>
    %63 = vector.broadcast %62 : vector<8x1xf32> to vector<8x16xf32>
    %64 = arith.subf %60, %63 : vector<8x16xf32>
    %65 = math.exp %64 : vector<8x16xf32>
    %cst_28 = arith.constant dense<0.000000e+00> : vector<8xf32>
    %66 = vector.multi_reduction <add>, %65, %cst_28 [1] : vector<8x16xf32> to vector<8xf32>
    %67 = vector.shape_cast %66 : vector<8xf32> to vector<8x1xf32>
    %68 = tpu.reciprocal %67 {approx = true} : vector<8x1xf32> -> vector<8x1xf32>
    %69 = arith.truncf %65 : vector<8x16xf32> to vector<8x16xbf16>
    %70 = vector.extract_strided_slice %18 {offsets = [0, 192], sizes = [16, 32], strides = [1, 1]} : vector<16x256xbf16> to vector<16x32xbf16>
    %cst_29 = arith.constant dense<0.000000e+00> : vector<8x32xf32>
    %71 = tpu.matmul %69, %70, %cst_29 {dimension_numbers = #tpu.dot_dimension_numbers<[1], [0], [0], [1], [0, 0, 1, 1], [], []>} : vector<8x16xbf16>, vector<16x32xbf16>, vector<8x32xf32> -> vector<8x32xf32>
    %72 = vector.broadcast %68 : vector<8x1xf32> to vector<8x32xf32>
    %73 = arith.mulf %71, %72 : vector<8x32xf32>
    %74 = vector.extract_strided_slice %16 {offsets = [0, 96], sizes = [8, 32], strides = [1, 1]} : vector<8x128xbf16> to vector<8x32xbf16>
    %75 = vector.extract_strided_slice %18 {offsets = [0, 96], sizes = [16, 32], strides = [1, 1]} : vector<16x256xbf16> to vector<16x32xbf16>
    %cst_30 = arith.constant dense<0.000000e+00> : vector<8x16xf32>
    %76 = tpu.matmul %74, %75, %cst_30 {dimension_numbers = #tpu.dot_dimension_numbers<[1], [1], [0], [0], [0, 0, 1, 0], [], []>} : vector<8x32xbf16>, vector<16x32xbf16>, vector<8x16xf32> -> vector<8x16xf32>
    %77 = arith.addf %76, %22 : vector<8x16xf32>
    %cst_31 = arith.constant dense<0xFF800000> : vector<8xf32>
    %78 = vector.multi_reduction <maximumf>, %77, %cst_31 [1] : vector<8x16xf32> to vector<8xf32>
    %79 = vector.shape_cast %78 : vector<8xf32> to vector<8x1xf32>
    %80 = vector.broadcast %79 : vector<8x1xf32> to vector<8x16xf32>
    %81 = arith.subf %77, %80 : vector<8x16xf32>
    %82 = math.exp %81 : vector<8x16xf32>
    %cst_32 = arith.constant dense<0.000000e+00> : vector<8xf32>
    %83 = vector.multi_reduction <add>, %82, %cst_32 [1] : vector<8x16xf32> to vector<8xf32>
    %84 = vector.shape_cast %83 : vector<8xf32> to vector<8x1xf32>
    %85 = tpu.reciprocal %84 {approx = true} : vector<8x1xf32> -> vector<8x1xf32>
    %86 = arith.truncf %82 : vector<8x16xf32> to vector<8x16xbf16>
    %87 = vector.extract_strided_slice %18 {offsets = [0, 224], sizes = [16, 32], strides = [1, 1]} : vector<16x256xbf16> to vector<16x32xbf16>
    %cst_33 = arith.constant dense<0.000000e+00> : vector<8x32xf32>
    %88 = tpu.matmul %86, %87, %cst_33 {dimension_numbers = #tpu.dot_dimension_numbers<[1], [0], [0], [1], [0, 0, 1, 1], [], []>} : vector<8x16xbf16>, vector<16x32xbf16>, vector<8x32xf32> -> vector<8x32xf32>
    %89 = vector.broadcast %85 : vector<8x1xf32> to vector<8x32xf32>
    %90 = arith.mulf %88, %89 : vector<8x32xf32>
    %91 = tpu.concatenate %39, %56, %73, %90 in 1 : vector<8x32xf32>, vector<8x32xf32>, vector<8x32xf32>, vector<8x32xf32> -> vector<8x128xf32>
    %92 = arith.truncf %91 : vector<8x128xf32> to vector<8x128xbf16>
    %c0_34 = arith.constant 0 : index
    %c0_35 = arith.constant 0 : index
    %93 = vector.load %arg7[%c0_34, %c0_35] : memref<128x128xbf16, #tpu.memory_space<vmem>>, vector<128x128xbf16>
    %cst_36 = arith.constant dense<0.000000e+00> : vector<8x128xf32>
    %94 = tpu.matmul %92, %93, %cst_36 {dimension_numbers = #tpu.dot_dimension_numbers<[1], [0], [0], [1], [0, 0, 1, 1], [], []>} : vector<8x128xbf16>, vector<128x128xbf16>, vector<8x128xf32> -> vector<8x128xf32>
    %95 = vector.broadcast %3 : vector<1x128xf32> to vector<8x128xf32>
    %96 = arith.addf %94, %95 : vector<8x128xf32>
    %97 = arith.addf %96, %10 : vector<8x128xf32>
    %cst_37 = arith.constant dense<0.000000e+00> : vector<8xf32>
    %98 = vector.multi_reduction <add>, %97, %cst_37 [1] : vector<8x128xf32> to vector<8xf32>
    %99 = vector.shape_cast %98 : vector<8xf32> to vector<8x1xf32>
    %cst_38 = arith.constant 1.280000e+02 : f32
    %100 = vector.broadcast %cst_38 : f32 to vector<8x1xf32>
    %101 = arith.divf %99, %100 : vector<8x1xf32>
    %102 = vector.broadcast %101 : vector<8x1xf32> to vector<8x128xf32>
    %103 = arith.subf %97, %102 : vector<8x128xf32>
    %104 = arith.mulf %103, %103 : vector<8x128xf32>
    %cst_39 = arith.constant dense<0.000000e+00> : vector<8xf32>
    %105 = vector.multi_reduction <add>, %104, %cst_39 [1] : vector<8x128xf32> to vector<8xf32>
    %106 = vector.shape_cast %105 : vector<8xf32> to vector<8x1xf32>
    %cst_40 = arith.constant 1.280000e+02 : f32
    %107 = vector.broadcast %cst_40 : f32 to vector<8x1xf32>
    %108 = arith.divf %106, %107 : vector<8x1xf32>
    %cst_41 = arith.constant 9.99999996E-13 : f32
    %109 = vector.broadcast %cst_41 : f32 to vector<8x1xf32>
    %110 = arith.addf %108, %109 : vector<8x1xf32>
    %111 = math.rsqrt %110 : vector<8x1xf32>
    %112 = vector.broadcast %111 : vector<8x1xf32> to vector<8x128xf32>
    %113 = arith.mulf %103, %112 : vector<8x128xf32>
    %114 = vector.broadcast %4 : vector<1x128xf32> to vector<8x128xf32>
    %115 = arith.mulf %113, %114 : vector<8x128xf32>
    %116 = vector.broadcast %5 : vector<1x128xf32> to vector<8x128xf32>
    %117 = arith.addf %115, %116 : vector<8x128xf32>
    %118 = vector.shape_cast %117 : vector<8x128xf32> to vector<1x8x128xf32>
    %c0_42 = arith.constant 0 : index
    %c0_43 = arith.constant 0 : index
    %c0_44 = arith.constant 0 : index
    %119 = vector.load %arg9[%c0_42, %c0_43, %c0_44] : memref<1x8x128xf32, #tpu.memory_space<vmem>>, vector<1x8x128xf32>
    tpu.vector_store %arg9[%c0_42, %c0_43, %c0_44], %118 {strides = array<i32>} : memref<1x8x128xf32, #tpu.memory_space<vmem>>, vector<1x8x128xf32>,
    return
  }
  func.func @transform_0(%arg0: i32, %arg1: i32) -> (i32, i32, i32) {
    %c0_i32 = arith.constant 0 : i32
    %c0_i32_0 = arith.constant 0 : i32
    return %arg0, %arg1, %c0_i32 : i32, i32, i32
  }
  func.func @transform_1(%arg0: i32, %arg1: i32) -> (i32, i32, i32) {
    %c0_i32 = arith.constant 0 : i32
    %c0_i32_0 = arith.constant 0 : i32
    %c0_i32_1 = arith.constant 0 : i32
    return %arg0, %c0_i32, %c0_i32_0 : i32, i32, i32
  }
  func.func @transform_2(%arg0: i32, %arg1: i32) -> (i32, i32, i32) {
    %c0_i32 = arith.constant 0 : i32
    %c0_i32_0 = arith.constant 0 : i32
    %c0_i32_1 = arith.constant 0 : i32
    return %arg0, %c0_i32, %c0_i32_0 : i32, i32, i32
  }
  func.func @transform_3(%arg0: i32, %arg1: i32) -> (i32, i32) {
    %c0_i32 = arith.constant 0 : i32
    %c0_i32_0 = arith.constant 0 : i32
    %c0_i32_1 = arith.constant 0 : i32
    return %c0_i32, %c0_i32_0 : i32, i32
  }
  func.func @transform_4(%arg0: i32, %arg1: i32) -> (i32, i32) {
    %c0_i32 = arith.constant 0 : i32
    %c0_i32_0 = arith.constant 0 : i32
    %c0_i32_1 = arith.constant 0 : i32
    return %c0_i32, %c0_i32_0 : i32, i32
  }
  func.func @transform_5(%arg0: i32, %arg1: i32) -> (i32, i32) {
    %c0_i32 = arith.constant 0 : i32
    %c0_i32_0 = arith.constant 0 : i32
    %c0_i32_1 = arith.constant 0 : i32
    return %c0_i32, %c0_i32_0 : i32, i32
  }
  func.func @transform_6(%arg0: i32, %arg1: i32) -> (i32, i32) {
    %c0_i32 = arith.constant 0 : i32
    %c0_i32_0 = arith.constant 0 : i32
    %c0_i32_1 = arith.constant 0 : i32
    return %c0_i32, %c0_i32_0 : i32, i32
  }
  func.func @transform_7(%arg0: i32, %arg1: i32) -> (i32, i32, i32) {
    %c0_i32 = arith.constant 0 : i32
    %c0_i32_0 = arith.constant 0 : i32
    return %arg0, %arg1, %c0_i32 : i32, i32, i32
  }
}

</mosaic_0001>

<llo_original>
// kernel: tpu_custom_call.1
$region0: #{tpu_custom_call.1}
  #allocation0 [shape = 'u32[]', space=smem, size = 0x4, offset = 0x4, fixed_abs, tag = 'smem constant byte address 0x4 - core index']
  #allocation1 [shape = 'u32[72,128]{1,0:T(1,128)}', space=vmem, size = 0x9000, scoped, tag = 'internal scratch']
  #allocation2 [shape = 'bf16[1,16,256]{2,1,0:T(8,128)(2,1)}', space=vmem, size = 0x2000, scoped, tag = 'scratch operand']
  %s0 = inlined_call_operand.hbm [shape: f32[2,8,128], index: 0, kind: input, shape index: {}]
  %s1 = inlined_call_operand.hbm [shape: f32[2,16,128], index: 1, kind: input, shape index: {}]
  %s2 = inlined_call_operand.hbm [shape: f32[2,1,16], index: 2, kind: input, shape index: {}]
  %s3 = inlined_call_operand.hbm [shape: bf16[128,128], index: 3, kind: input, shape index: {}]
  %s4 = inlined_call_operand.hbm [shape: bf16[128,256], index: 4, kind: input, shape index: {}]
  %s5 = inlined_call_operand.hbm [shape: bf16[128,128], index: 5, kind: input, shape index: {}]
  %s6 = inlined_call_operand.hbm [shape: f32[8,128], index: 6, kind: input, shape index: {}]
  %s7 = inlined_call_operand.hbm [shape: f32[2,8,128], index: 7, kind: output, shape index: {}]
  %s8 = sld [smem:[#allocation0]]
  $region93: #{tpu_custom_call.1} parent=0
    _
  %s10 = ssub.s32 1, %s8
  %s11 = scalar_select 0, %s10, %s8
  $region1: #{tpu_custom_call.1} parent=0
    #allocation3 [shape = 'u8[8192]{0}', space=vmem, size = 0x2000, scoped, tag = 'input window, operand 0']
    #allocation4 [shape = 's32[2]{0}', space=sflag, size = 0x8, scoped, tag = 'scoped memory for tpu_custom_call.1']
    #allocation5 [shape = 's32[2]{0}', space=sflag, size = 0x8, scoped, tag = 'scoped memory for tpu_custom_call.1']
    #allocation6 [shape = 'u8[16384]{0}', space=vmem, size = 0x4000, scoped, tag = 'input window, operand 1']
    #allocation7 [shape = 's32[2]{0}', space=sflag, size = 0x8, scoped, tag = 'scoped memory for tpu_custom_call.1']
    #allocation8 [shape = 'u8[1024]{0}', space=vmem, size = 0x400, scoped, tag = 'input window, operand 2']
    #allocation9 [shape = 'u8[32768]{0}', space=vmem, size = 0x8000, scoped, tag = 'input window, operand 3, single buffered']
    #allocation10 [shape = 's32[1]{0}', space=sflag, size = 0x4, scoped, tag = 'scoped memory for tpu_custom_call.1']
    #allocation11 [shape = 'u8[65536]{0}', space=vmem, size = 0x10000, scoped, tag = 'input window, operand 4, single buffered']
    #allocation12 [shape = 'u8[32768]{0}', space=vmem, size = 0x8000, scoped, tag = 'input window, operand 5, single buffered']
    #allocation13 [shape = 's32[1]{0}', space=sflag, size = 0x4, scoped, tag = 'scoped memory for tpu_custom_call.1']
    #allocation14 [shape = 'u8[4096]{0}', space=vmem, size = 0x1000, scoped, tag = 'input window, operand 6, single buffered']
    #allocation15 [shape = 'u8[8192]{0}', space=vmem, size = 0x2000, scoped, tag = 'output window, operand 0']
    %12 = vsyncpa [#allocation4], 0
    %s13 = scalar_lea.sflag [#allocation4], 1
    %14 = vsyncpa %s13, 0
    %15 = vsyncpa [#allocation7], 0
    %s16 = scalar_lea.sflag [#allocation7], 1
    %17 = vsyncpa %s16, 0
    %18 = vsyncpa [#allocation10], 0
    %19 = vsyncpa [#allocation13], 0
    %20 = vsyncpa [#allocation5], 0
    %s21 = scalar_lea.sflag [#allocation5], 1
    %22 = vsyncpa %s21, 0
    loop: start=0, step=1, limit=4
    $region2: #{tpu_custom_call.1} parent=1 // loop_pre_header
      _
    $region3: #{tpu_custom_call.1} parent=1 // loop_header
      %s24 = sphi 0, %s28
      %p25 = scmp.ge.s32.totalorder %s24, 4
      %s31 = sphi 0, %s43
      %s32 = sphi 0, %s39
      %s33 = sphi 0, %s31
      %s34 = sphi 0, %s32
      %s35 = sphi 0, %s33
      %s36 = sphi 0, %s34
      %s48 = sphi 0, %s50
      %s51 = sphi 0, %s48
      %s52 = sphi 0, %s51
      %s68 = sphi 0, %s52
      %s74 = sphi 0, %s76
      %s77 = sphi 0, %s74
      %s78 = sphi 0, %s77
      %s94 = sphi 0, %s78
      %s100 = sphi 0, %s102
      %s103 = sphi 0, %s100
      %s104 = sphi 0, %s103
      %s120 = sphi 0, %s104
      %s124 = sphi 0, %s124
      %s126 = sphi 0, %s124
      %s127 = sphi 0, %s126
      %s141 = sphi 0, %s127
      %s145 = sphi 0, %s145
      %s147 = sphi 0, %s145
      %s148 = sphi 0, %s147
      %s162 = sphi 0, %s148
      %s166 = sphi 0, %s166
      %s168 = sphi 0, %s166
      %s169 = sphi 0, %s168
      %s183 = sphi 0, %s169
      %s187 = sphi 0, %s187
      %s189 = sphi 0, %s187
      %s190 = sphi 0, %s189
      %s204 = sphi 0, %s190
      %s212 = sphi 0, %s214
      %s215 = sphi 0, %s212
      %s216 = sphi 0, %s215
      %s232 = sphi 0, %s216
    $region4: #{tpu_custom_call.1} parent=1 // loop_header_branch
      %27 = sbr.rel (%p25) target = $region8
    $region5: #{tpu_custom_call.1} parent=1 // loop_body
      %s29 = ssub.s32 %s24, 1
      %s30 = ssub.s32 %s24, 2
      %s37 = sadd.s32 1, %s32
      %p38 = scmp.ge.s32.totalorder %s37, 1
      %s39 = scalar_select %p38, 0, %s37
      %s40 = sadd.s32 1, %s31
      %s41 = scalar_select %p38, %s40, %s31
      %p42 = scmp.ge.s32.totalorder %s41, 2
      %s43 = scalar_select %p42, 0, %s41
      %s44 = ssub.s32 %s31, %s43
      %s45 = ssub.s32 %s32, %s39
      %s46 = sor.u32 %s44, %s45
      %p47 = scmp.eq.s32.totalorder %s46, 0
      %s49 = sadd.s32 %s48, 1
      %s50 = scalar_select %p47, %s48, %s49
      %p53 = pneg %p47
      %p54 = scmp.eq.s32.totalorder %s24, 1
      %p55 = por %p53, %p54
      %p56 = scmp.ne.s32.totalorder %s48, %s51
      %p57 = scmp.eq.s32.totalorder %s24, 0
      %p58 = por %p56, %p57
      %p59 = scmp.ne.s32.totalorder %s48, %s51
      %p60 = scmp.eq.s32.totalorder %s29, 1
      %p61 = por %p59, %p60
      %p62 = scmp.ne.s32.totalorder %s51, %s52
      %p63 = scmp.eq.s32.totalorder %s29, 0
      %p64 = por %p62, %p63
      %p65 = scmp.ne.s32.totalorder %s51, %s52
      %p66 = scmp.eq.s32.totalorder %s30, 1
      %p67 = por %p65, %p66
      %p69 = scmp.ne.s32.totalorder %s52, %s68
      %p70 = scmp.eq.s32.totalorder %s30, 0
      %p71 = por %p69, %p70
      %s72 = ssub.s32 %s31, %s43
      %p73 = scmp.eq.s32.totalorder %s72, 0
      %s75 = sadd.s32 %s74, 1
      %s76 = scalar_select %p73, %s74, %s75
      %p79 = pneg %p73
      %p80 = scmp.eq.s32.totalorder %s24, 1
      %p81 = por %p79, %p80
      %p82 = scmp.ne.s32.totalorder %s74, %s77
      %p83 = scmp.eq.s32.totalorder %s24, 0
      %p84 = por %p82, %p83
      %p85 = scmp.ne.s32.totalorder %s74, %s77
      %p86 = scmp.eq.s32.totalorder %s29, 1
      %p87 = por %p85, %p86
      %p88 = scmp.ne.s32.totalorder %s77, %s78
      %p89 = scmp.eq.s32.totalorder %s29, 0
      %p90 = por %p88, %p89
      %p91 = scmp.ne.s32.totalorder %s77, %s78
      %p92 = scmp.eq.s32.totalorder %s30, 1
      %p93 = por %p91, %p92
      %p95 = scmp.ne.s32.totalorder %s78, %s94
      %p96 = scmp.eq.s32.totalorder %s30, 0
      %p97 = por %p95, %p96
      %s98 = ssub.s32 %s31, %s43
      %p99 = scmp.eq.s32.totalorder %s98, 0
      %s101 = sadd.s32 %s100, 1
      %s102 = scalar_select %p99, %s100, %s101
      %p105 = pneg %p99
      %p106 = scmp.eq.s32.totalorder %s24, 1
      %p107 = por %p105, %p106
      %p108 = scmp.ne.s32.totalorder %s100, %s103
      %p109 = scmp.eq.s32.totalorder %s24, 0
      %p110 = por %p108, %p109
      %p111 = scmp.ne.s32.totalorder %s100, %s103
      %p112 = scmp.eq.s32.totalorder %s29, 1
      %p113 = por %p111, %p112
      %p114 = scmp.ne.s32.totalorder %s103, %s104
      %p115 = scmp.eq.s32.totalorder %s29, 0
      %p116 = por %p114, %p115
      %p117 = scmp.ne.s32.totalorder %s103, %s104
      %p118 = scmp.eq.s32.totalorder %s30, 1
      %p119 = por %p117, %p118
      %p121 = scmp.ne.s32.totalorder %s104, %s120
      %p122 = scmp.eq.s32.totalorder %s30, 0
      %p123 = por %p121, %p122
      %s125 = sadd.s32 %s124, 1
      %p128 = scmp.eq.s32.totalorder %s24, 1
      %p129 = scmp.ne.s32.totalorder %s124, %s126
      %p130 = scmp.eq.s32.totalorder %s24, 0
      %p131 = por %p129, %p130
      %p132 = scmp.ne.s32.totalorder %s124, %s126
      %p133 = scmp.eq.s32.totalorder %s29, 1
      %p134 = por %p132, %p133
      %p135 = scmp.ne.s32.totalorder %s126, %s127
      %p136 = scmp.eq.s32.totalorder %s29, 0
      %p137 = por %p135, %p136
      %p138 = scmp.ne.s32.totalorder %s126, %s127
      %p139 = scmp.eq.s32.totalorder %s30, 1
      %p140 = por %p138, %p139
      %p142 = scmp.ne.s32.totalorder %s127, %s141
      %p143 = scmp.eq.s32.totalorder %s30, 0
      %p144 = por %p142, %p143
      %s146 = sadd.s32 %s145, 1
      %p149 = scmp.eq.s32.totalorder %s24, 1
      %p150 = scmp.ne.s32.totalorder %s145, %s147
      %p151 = scmp.eq.s32.totalorder %s24, 0
      %p152 = por %p150, %p151
      %p153 = scmp.ne.s32.totalorder %s145, %s147
      %p154 = scmp.eq.s32.totalorder %s29, 1
      %p155 = por %p153, %p154
      %p156 = scmp.ne.s32.totalorder %s147, %s148
      %p157 = scmp.eq.s32.totalorder %s29, 0
      %p158 = por %p156, %p157
      %p159 = scmp.ne.s32.totalorder %s147, %s148
      %p160 = scmp.eq.s32.totalorder %s30, 1
      %p161 = por %p159, %p160
      %p163 = scmp.ne.s32.totalorder %s148, %s162
      %p164 = scmp.eq.s32.totalorder %s30, 0
      %p165 = por %p163, %p164
      %s167 = sadd.s32 %s166, 1
      %p170 = scmp.eq.s32.totalorder %s24, 1
      %p171 = scmp.ne.s32.totalorder %s166, %s168
      %p172 = scmp.eq.s32.totalorder %s24, 0
      %p173 = por %p171, %p172
      %p174 = scmp.ne.s32.totalorder %s166, %s168
      %p175 = scmp.eq.s32.totalorder %s29, 1
      %p176 = por %p174, %p175
      %p177 = scmp.ne.s32.totalorder %s168, %s169
      %p178 = scmp.eq.s32.totalorder %s29, 0
      %p179 = por %p177, %p178
      %p180 = scmp.ne.s32.totalorder %s168, %s169
      %p181 = scmp.eq.s32.totalorder %s30, 1
      %p182 = por %p180, %p181
      %p184 = scmp.ne.s32.totalorder %s169, %s183
      %p185 = scmp.eq.s32.totalorder %s30, 0
      %p186 = por %p184, %p185
      %s188 = sadd.s32 %s187, 1
      %p191 = scmp.eq.s32.totalorder %s24, 1
      %p192 = scmp.ne.s32.totalorder %s187, %s189
      %p193 = scmp.eq.s32.totalorder %s24, 0
      %p194 = por %p192, %p193
      %p195 = scmp.ne.s32.totalorder %s187, %s189
      %p196 = scmp.eq.s32.totalorder %s29, 1
      %p197 = por %p195, %p196
      %p198 = scmp.ne.s32.totalorder %s189, %s190
      %p199 = scmp.eq.s32.totalorder %s29, 0
      %p200 = por %p198, %p199
      %p201 = scmp.ne.s32.totalorder %s189, %s190
      %p202 = scmp.eq.s32.totalorder %s30, 1
      %p203 = por %p201, %p202
      %p205 = scmp.ne.s32.totalorder %s190, %s204
      %p206 = scmp.eq.s32.totalorder %s30, 0
      %p207 = por %p205, %p206
      %s208 = ssub.s32 %s31, %s43
      %s209 = ssub.s32 %s32, %s39
      %s210 = sor.u32 %s208, %s209
      %p211 = scmp.eq.s32.totalorder %s210, 0
      %s213 = sadd.s32 %s212, 1
      %s214 = scalar_select %p211, %s212, %s213
      %p217 = pneg %p211
      %p218 = scmp.eq.s32.totalorder %s24, 1
      %p219 = por %p217, %p218
      %p220 = scmp.ne.s32.totalorder %s212, %s215
      %p221 = scmp.eq.s32.totalorder %s24, 0
      %p222 = por %p220, %p221
      %p223 = scmp.ne.s32.totalorder %s212, %s215
      %p224 = scmp.eq.s32.totalorder %s29, 1
      %p225 = por %p223, %p224
      %p226 = scmp.ne.s32.totalorder %s215, %s216
      %p227 = scmp.eq.s32.totalorder %s29, 0
      %p228 = por %p226, %p227
      %p229 = scmp.ne.s32.totalorder %s215, %s216
      %p230 = scmp.eq.s32.totalorder %s30, 1
      %p231 = por %p229, %p230
      %p233 = scmp.ne.s32.totalorder %s216, %s232
      %p234 = scmp.eq.s32.totalorder %s30, 0
      %p235 = por %p233, %p234
      %p236 = scmp.le.s32.totalorder 1, %s24
      %p237 = scmp.lt.s32.totalorder %s24, 3
      %p238 = pnand %p236, %p237
      %p239 = pneg %p238
      // Predicated region
      $region9: #{tpu_custom_call.1} parent=5 // pred_check
        _
      $region10: #{tpu_custom_call.1} parent=5 // pred_check_branch
        %241 = sbr.rel (%p238) target = $region12
      $region11: #{tpu_custom_call.1} parent=5 // pred_region
        %s242 = ssub.s32 %s24, 1
        // Predicated region
        $region13: #{tpu_custom_call.1} parent=11 // pred_check
          %p243 = pneg %p137
        $region14: #{tpu_custom_call.1} parent=11 // pred_check_branch
          %245 = sbr.rel (%p243) target = $region16
        $region15: #{tpu_custom_call.1} parent=11 // pred_region
          %247 = vsyncadd [#allocation10], 0
          %s248 = sshll.u32 %s3, 4
          %s249 = int_to_ptr.hbm [resolvable:$true] %s248
          %s250 = sshll.u32 [#allocation9], 4
          %s251 = int_to_ptr.vmem [resolvable:$true] %s250
          %256 = dma.hbm_to_vmem [thread:$0]  %s249, 1024, %s251, [#allocation10], 64, 64, 4
        $region16: #{tpu_custom_call.1} parent=11 // pred_fallthru
          _
        // Predicated region
        $region17: #{tpu_custom_call.1} parent=11 // pred_check
          %p257 = pneg %p158
        $region18: #{tpu_custom_call.1} parent=11 // pred_check_branch
          %259 = sbr.rel (%p257) target = $region20
        $region19: #{tpu_custom_call.1} parent=11 // pred_region
          %261 = vsyncadd [#allocation10], 0
          %s262 = sshll.u32 %s4, 4
          %s263 = int_to_ptr.hbm [resolvable:$true] %s262
          %s264 = sshll.u32 [#allocation11], 4
          %s265 = int_to_ptr.vmem [resolvable:$true] %s264
          %270 = dma.hbm_to_vmem [thread:$0]  %s263, 2048, %s265, [#allocation10], 128, 128, 8
        $region20: #{tpu_custom_call.1} parent=11 // pred_fallthru
          _
        // Predicated region
        $region21: #{tpu_custom_call.1} parent=11 // pred_check
          %p271 = pneg %p179
        $region22: #{tpu_custom_call.1} parent=11 // pred_check_branch
          %273 = sbr.rel (%p271) target = $region24
        $region23: #{tpu_custom_call.1} parent=11 // pred_region
          %275 = vsyncadd [#allocation13], 0
          %s276 = sshll.u32 %s5, 4
          %s277 = int_to_ptr.hbm [resolvable:$true] %s276
          %s278 = sshll.u32 [#allocation12], 4
          %s279 = int_to_ptr.vmem [resolvable:$true] %s278
          %284 = dma.hbm_to_vmem [thread:$0]  %s277, 1024, %s279, [#allocation13], 64, 64, 4
        $region24: #{tpu_custom_call.1} parent=11 // pred_fallthru
          _
        // Predicated region
        $region25: #{tpu_custom_call.1} parent=11 // pred_check
          %p285 = pneg %p200
        $region26: #{tpu_custom_call.1} parent=11 // pred_check_branch
          %287 = sbr.rel (%p285) target = $region28
        $region27: #{tpu_custom_call.1} parent=11 // pred_region
          %289 = vsyncadd [#allocation13], 0
          %s291 = sshll.u32 %s6, 4
          %s292 = int_to_ptr.hbm [resolvable:$true] %s291
          %s293 = sshll.u32 [#allocation14], 4
          %s294 = int_to_ptr.vmem [resolvable:$true] %s293
          %296 = dma.hbm_to_vmem [thread:$0]  %s292, 128, %s294, [#allocation13]
        $region28: #{tpu_custom_call.1} parent=11 // pred_fallthru
          _
      $region12: #{tpu_custom_call.1} parent=5 // pred_fallthru
        _
      %p297 = scmp.lt.s32.totalorder %s24, 2
      // Predicated region
      $region29: #{tpu_custom_call.1} parent=5 // pred_check
        %p298 = pneg %p297
      $region30: #{tpu_custom_call.1} parent=5 // pred_check_branch
        %300 = sbr.rel (%p298) target = $region32
      $region31: #{tpu_custom_call.1} parent=5 // pred_region
        // Predicated region
        $region33: #{tpu_custom_call.1} parent=31 // pred_check
          %p301 = pneg %p58
        $region34: #{tpu_custom_call.1} parent=31 // pred_check_branch
          %303 = sbr.rel (%p301) target = $region36
        $region35: #{tpu_custom_call.1} parent=31 // pred_region
          %s304 = sand.u32 %s48, 1
          %s305 = scalar_lea.sflag [#allocation4], %s304
          %s306 = sand.u32 %s48, 1
          %s307 = smul.addr %s306, 8
          %s308 = scalar_lea.vmem [#allocation3], %s307
          %310 = vsyncadd %s305, 0
          %s311 = sadd.s32 %s32, %s31
          %s312 = smul.addr %s311, 8
          %s313 = scalar_lea.hbm %s0, %s312
          %s315 = sshll.u32 %s313, 4
          %s316 = int_to_ptr.hbm [resolvable:$true] %s315
          %s317 = sshll.u32 %s308, 4
          %s318 = int_to_ptr.vmem [resolvable:$true] %s317
          %320 = dma.hbm_to_vmem [thread:$0]  %s316, 128, %s318, %s305
        $region36: #{tpu_custom_call.1} parent=31 // pred_fallthru
          _
        // Predicated region
        $region37: #{tpu_custom_call.1} parent=31 // pred_check
          %p321 = pneg %p84
        $region38: #{tpu_custom_call.1} parent=31 // pred_check_branch
          %323 = sbr.rel (%p321) target = $region40
        $region39: #{tpu_custom_call.1} parent=31 // pred_region
          %s324 = sand.u32 %s24, 1
          %s325 = scalar_lea.sflag [#allocation7], %s324
          %s326 = sand.u32 %s74, 1
          %s327 = smul.addr %s326, 16
          %s328 = scalar_lea.vmem [#allocation6], %s327
          %330 = vsyncadd %s325, 0
          %s331 = smul.addr %s31, 2
          %s332 = smul.addr %s331, 8
          %s333 = scalar_lea.hbm %s1, %s332
          %s334 = sshll.u32 %s333, 4
          %s335 = int_to_ptr.hbm [resolvable:$true] %s334
          %s336 = sshll.u32 %s328, 4
          %s337 = int_to_ptr.vmem [resolvable:$true] %s336
          %342 = dma.hbm_to_vmem [thread:$0]  %s335, 256, %s337, %s325, 128, 128, 8
        $region40: #{tpu_custom_call.1} parent=31 // pred_fallthru
          _
        // Predicated region
        $region41: #{tpu_custom_call.1} parent=31 // pred_check
          %p343 = pneg %p110
        $region42: #{tpu_custom_call.1} parent=31 // pred_check_branch
          %345 = sbr.rel (%p343) target = $region44
        $region43: #{tpu_custom_call.1} parent=31 // pred_region
          %s346 = sand.u32 %s24, 1
          %s347 = scalar_lea.sflag [#allocation7], %s346
          %s348 = sand.u32 %s100, 1
          %s349 = scalar_lea.vmem [#allocation8], %s348
          %351 = vsyncadd %s347, 0
          %s352 = scalar_lea.hbm %s2, %s31
          %s354 = sshll.u32 %s352, 4
          %s355 = int_to_ptr.hbm [resolvable:$true] %s354
          %s356 = sshll.u32 %s349, 4
          %s357 = int_to_ptr.vmem [resolvable:$true] %s356
          %359 = dma.hbm_to_vmem [thread:$0]  %s355, 16, %s357, %s347
        $region44: #{tpu_custom_call.1} parent=31 // pred_fallthru
          _
      $region32: #{tpu_custom_call.1} parent=5 // pred_fallthru
        _
      %p360 = scmp.le.s32.totalorder 1, %s24
      %p361 = scmp.lt.s32.totalorder %s24, 3
      %p362 = pnand %p360, %p361
      %p363 = pneg %p362
      // Predicated region
      $region45: #{tpu_custom_call.1} parent=5 // pred_check
        _
      $region46: #{tpu_custom_call.1} parent=5 // pred_check_branch
        %365 = sbr.rel (%p362) target = $region48
      $region47: #{tpu_custom_call.1} parent=5 // pred_region
        %s366 = ssub.s32 %s24, 1
        %s367 = sand.u32 %s51, 1
        %s368 = scalar_lea.sflag [#allocation4], %s367
        %s369 = sand.u32 %s51, 1
        %s370 = smul.addr %s369, 8
        %s371 = scalar_lea.vmem [#allocation3], %s370
        // Predicated region
        $region49: #{tpu_custom_call.1} parent=47 // pred_check
          %p372 = pneg %p64
        $region50: #{tpu_custom_call.1} parent=47 // pred_check_branch
          %374 = sbr.rel (%p372) target = $region52
        $region51: #{tpu_custom_call.1} parent=47 // pred_region
          %376 = dma.done %s368, 128
        $region52: #{tpu_custom_call.1} parent=47 // pred_fallthru
          _
        %s377 = sand.u32 %s29, 1
        %s378 = scalar_lea.sflag [#allocation7], %s377
        %s379 = sand.u32 %s77, 1
        %s380 = smul.addr %s379, 16
        %s381 = scalar_lea.vmem [#allocation6], %s380
        // Predicated region
        $region53: #{tpu_custom_call.1} parent=47 // pred_check
          %p382 = pneg %p90
        $region54: #{tpu_custom_call.1} parent=47 // pred_check_branch
          %384 = sbr.rel (%p382) target = $region56
        $region55: #{tpu_custom_call.1} parent=47 // pred_region
          %386 = dma.done %s378, 256
        $region56: #{tpu_custom_call.1} parent=47 // pred_fallthru
          _
        %s387 = sand.u32 %s29, 1
        %s388 = scalar_lea.sflag [#allocation7], %s387
        %s389 = sand.u32 %s103, 1
        %s390 = scalar_lea.vmem [#allocation8], %s389
        // Predicated region
        $region57: #{tpu_custom_call.1} parent=47 // pred_check
          %p391 = pneg %p116
        $region58: #{tpu_custom_call.1} parent=47 // pred_check_branch
          %393 = sbr.rel (%p391) target = $region60
        $region59: #{tpu_custom_call.1} parent=47 // pred_region
          %395 = dma.done %s388, 16
        $region60: #{tpu_custom_call.1} parent=47 // pred_fallthru
          _
        // Predicated region
        $region61: #{tpu_custom_call.1} parent=47 // pred_check
          %p396 = pneg %p137
        $region62: #{tpu_custom_call.1} parent=47 // pred_check_branch
          %398 = sbr.rel (%p396) target = $region64
        $region63: #{tpu_custom_call.1} parent=47 // pred_region
          %400 = dma.done [#allocation10], 1024
        $region64: #{tpu_custom_call.1} parent=47 // pred_fallthru
          _
        // Predicated region
        $region65: #{tpu_custom_call.1} parent=47 // pred_check
          %p401 = pneg %p158
        $region66: #{tpu_custom_call.1} parent=47 // pred_check_branch
          %403 = sbr.rel (%p401) target = $region68
        $region67: #{tpu_custom_call.1} parent=47 // pred_region
          %405 = dma.done [#allocation10], 2048
        $region68: #{tpu_custom_call.1} parent=47 // pred_fallthru
          _
        // Predicated region
        $region69: #{tpu_custom_call.1} parent=47 // pred_check
          %p406 = pneg %p179
        $region70: #{tpu_custom_call.1} parent=47 // pred_check_branch
          %408 = sbr.rel (%p406) target = $region72
        $region71: #{tpu_custom_call.1} parent=47 // pred_region
          %410 = dma.done [#allocation13], 1024
        $region72: #{tpu_custom_call.1} parent=47 // pred_fallthru
          _
        // Predicated region
        $region73: #{tpu_custom_call.1} parent=47 // pred_check
          %p411 = pneg %p200
        $region74: #{tpu_custom_call.1} parent=47 // pred_check_branch
          %413 = sbr.rel (%p411) target = $region76
        $region75: #{tpu_custom_call.1} parent=47 // pred_region
          %415 = dma.done [#allocation13], 128
        $region76: #{tpu_custom_call.1} parent=47 // pred_fallthru
          _
        %s416 = sand.u32 %s51, 1
        %s417 = scalar_lea.sflag [#allocation4], %s416
        %s418 = sand.u32 %s51, 1
        %s419 = smul.addr %s418, 8
        %s420 = scalar_lea.vmem [#allocation3], %s419
        %p421 = pneg %p64
        %p422 = pneg %p61
        %s423 = sand.u32 %s29, 1
        %s424 = scalar_lea.sflag [#allocation7], %s423
        %s425 = sand.u32 %s77, 1
        %s426 = smul.addr %s425, 16
        %s427 = scalar_lea.vmem [#allocation6], %s426
        %p428 = pneg %p90
        %p429 = pneg %p87
        %s430 = sand.u32 %s29, 1
        %s431 = scalar_lea.sflag [#allocation7], %s430
        %s432 = sand.u32 %s103, 1
        %s433 = scalar_lea.vmem [#allocation8], %s432
        %p434 = pneg %p116
        %p435 = pneg %p113
        %p436 = pneg %p137
        %p437 = pneg %p134
        %p438 = pneg %p158
        %p439 = pneg %p155
        %p440 = pneg %p179
        %p441 = pneg %p176
        %p442 = pneg %p200
        %p443 = pneg %p197
        %p444 = pneg %p228
        %p445 = pneg %p225
        %s446 = sand.u32 %s215, 1
        %s447 = scalar_lea.sflag [#allocation5], %s446
        %s448 = sand.u32 %s215, 1
        %s449 = smul.addr %s448, 8
        %s450 = scalar_lea.vmem [#allocation15], %s449
        %v452 = vld [vmem:[#allocation14] sm:$0x1]
        %v453 = vld [vmem:[#allocation14 + $0x1] sm:$0x1]
        %v454 = vld [vmem:[#allocation14 + $0x2] sm:$0x1]
        %v455 = vld [vmem:[#allocation14 + $0x3] sm:$0x1]
        %v456 = vld [vmem:[#allocation14 + $0x4] sm:$0x1]
        %v457 = vld [vmem:[#allocation14 + $0x5] sm:$0x1]
        %p458 = scmp.eq.s32.totalorder %s34, 0
        // Predicated region
        $region77: #{tpu_custom_call.1} parent=47 // pred_check
          %p459 = pneg %p458
        $region78: #{tpu_custom_call.1} parent=47 // pred_check_branch
          %461 = sbr.rel (%p459) target = $region80
        $region79: #{tpu_custom_call.1} parent=47 // pred_region
          %v462 = vld [vmem:[#allocation11] sm:$0xff]
          %v463 = vld [vmem:[#allocation11 + $0x8] sm:$0xff]
          %v464 = vld [vmem:[#allocation11 + $0x10] sm:$0xff]
          %v465 = vld [vmem:[#allocation11 + $0x18] sm:$0xff]
          %v466 = vld [vmem:[#allocation11 + $0x20] sm:$0xff]
          %v467 = vld [vmem:[#allocation11 + $0x28] sm:$0xff]
          %v468 = vld [vmem:[#allocation11 + $0x30] sm:$0xff]
          %v469 = vld [vmem:[#allocation11 + $0x38] sm:$0xff]
          %v470 = vld [vmem:[#allocation11 + $0x40] sm:$0xff]
          %v471 = vld [vmem:[#allocation11 + $0x48] sm:$0xff]
          %v472 = vld [vmem:[#allocation11 + $0x50] sm:$0xff]
          %v473 = vld [vmem:[#allocation11 + $0x58] sm:$0xff]
          %v474 = vld [vmem:[#allocation11 + $0x60] sm:$0xff]
          %v475 = vld [vmem:[#allocation11 + $0x68] sm:$0xff]
          %v476 = vld [vmem:[#allocation11 + $0x70] sm:$0xff]
          %v477 = vld [vmem:[#allocation11 + $0x78] sm:$0xff]
          %v478 = vld [vmem:[%s381] sm:$0xff]
          %v479 = vld [vmem:[%s381 + $0x8] sm:$0xff]
          %v480 = vpack.c.bf16 %v479, %v478
          %v481 = vperm.slane %v453, 0
          %v482 = vperm.slane %v454, 0
          %v499 = vunpack.c.l.b16 %v462
          %v500 = vunpack.c.h.b16 %v462
          %v501 = vunpack.c.l.b16 %v463
          %v502 = vunpack.c.h.b16 %v463
          %v503 = vunpack.c.l.b16 %v464
          %v504 = vunpack.c.h.b16 %v464
          %v505 = vunpack.c.l.b16 %v465
          %v506 = vunpack.c.h.b16 %v465
          %v507 = vunpack.c.l.b16 %v466
          %v508 = vunpack.c.h.b16 %v466
          %v509 = vunpack.c.l.b16 %v467
          %v510 = vunpack.c.h.b16 %v467
          %v511 = vunpack.c.l.b16 %v468
          %v512 = vunpack.c.h.b16 %v468
          %v513 = vunpack.c.l.b16 %v469
          %v514 = vunpack.c.h.b16 %v469
          %v515 = vunpack.c.l.b16 %v470
          %v516 = vunpack.c.h.b16 %v470
          %v517 = vunpack.c.l.b16 %v471
          %v518 = vunpack.c.h.b16 %v471
          %v519 = vunpack.c.l.b16 %v472
          %v520 = vunpack.c.h.b16 %v472
          %v521 = vunpack.c.l.b16 %v473
          %v522 = vunpack.c.h.b16 %v473
          %v523 = vunpack.c.l.b16 %v474
          %v524 = vunpack.c.h.b16 %v474
          %v525 = vunpack.c.l.b16 %v475
          %v526 = vunpack.c.h.b16 %v475
          %v527 = vunpack.c.l.b16 %v476
          %v528 = vunpack.c.h.b16 %v476
          %v529 = vunpack.c.l.b16 %v477
          %v530 = vunpack.c.h.b16 %v477
          %v531 = vpack.c.b16 %v501, %v499
          %v532 = vpack.c.b16 %v502, %v500
          %v533 = vpack.c.b16 %v505, %v503
          %v534 = vpack.c.b16 %v506, %v504
          %v535 = vpack.c.b16 %v509, %v507
          %v536 = vpack.c.b16 %v510, %v508
          %v537 = vpack.c.b16 %v513, %v511
          %v538 = vpack.c.b16 %v514, %v512
          %v539 = vpack.c.b16 %v517, %v515
          %v540 = vpack.c.b16 %v518, %v516
          %v541 = vpack.c.b16 %v521, %v519
          %v542 = vpack.c.b16 %v522, %v520
          %v543 = vpack.c.b16 %v525, %v523
          %v544 = vpack.c.b16 %v526, %v524
          %v545 = vpack.c.b16 %v529, %v527
          %v546 = vpack.c.b16 %v530, %v528
          %563 = vmatpush.bf16.msra.mxu0 %v545
          %564 = vmatpush.bf16.msra.mxu0 %v543
          %565 = vmatpush.bf16.msra.mxu0 %v541
          %566 = vmatpush.bf16.msra.mxu0 %v539
          %567 = vmatpush.bf16.msra.mxu0 %v537
          %568 = vmatpush.bf16.msra.mxu0 %v535
          %569 = vmatpush.bf16.msra.mxu0 %v533
          %570 = vmatpush.bf16.msra.mxu0 %v531
          %571 = vmatmul.bf16.gmra.mxu0 %v480
          %v572 = vpop.f32.mrf.mxu0
          %v573 = vadd.f32 %v481, %v572
          %v574 = vpop.f32.mrf.mxu0
          %v575 = vadd.f32 %v481, %v574
          %576 = vdwg.mxu0
          %577 = vmatpush.bf16.msra.mxu0 %v546
          %578 = vmatpush.bf16.msra.mxu0 %v544
          %579 = vmatpush.bf16.msra.mxu0 %v542
          %580 = vmatpush.bf16.msra.mxu0 %v540
          %581 = vmatpush.bf16.msra.mxu0 %v538
          %582 = vmatpush.bf16.msra.mxu0 %v536
          %583 = vmatpush.bf16.msra.mxu0 %v534
          %584 = vmatpush.bf16.msra.mxu0 %v532
          %585 = vmatmul.bf16.gmra.mxu0 %v480
          %v586 = vpop.f32.mrf.mxu0
          %v587 = vadd.f32 %v482, %v586
          %v588 = vpop.f32.mrf.mxu0
          %v589 = vadd.f32 %v482, %v588
          %590 = vdwg.mxu0
          %v591 = vpack.c.bf16 %v587, %v573
          %v592 = vpack.c.bf16 %v589, %v575
          %593 = vst [vmem:[#allocation2] sm:$0xff] %v591
          %594 = vst [vmem:[#allocation2 + $0x8] sm:$0xff] %v592
        $region80: #{tpu_custom_call.1} parent=47 // pred_fallthru
          _
        %v595 = vld [vmem:[%s371] sm:$0xff]
        %v596 = vpack.c.bf16 %v595, %v595
        %v597 = vld [vmem:[#allocation9] sm:$0xf]
        %v598 = vld [vmem:[#allocation9 + $0x4] sm:$0xf]
        %v599 = vld [vmem:[#allocation9 + $0x8] sm:$0xf]
        %v600 = vld [vmem:[#allocation9 + $0xc] sm:$0xf]
        %v601 = vld [vmem:[#allocation9 + $0x10] sm:$0xf]
        %v602 = vld [vmem:[#allocation9 + $0x14] sm:$0xf]
        %v603 = vld [vmem:[#allocation9 + $0x18] sm:$0xf]
        %v604 = vld [vmem:[#allocation9 + $0x1c] sm:$0xf]
        %v605 = vld [vmem:[#allocation9 + $0x20] sm:$0xf]
        %v606 = vld [vmem:[#allocation9 + $0x24] sm:$0xf]
        %v607 = vld [vmem:[#allocation9 + $0x28] sm:$0xf]
        %v608 = vld [vmem:[#allocation9 + $0x2c] sm:$0xf]
        %v609 = vld [vmem:[#allocation9 + $0x30] sm:$0xf]
        %v610 = vld [vmem:[#allocation9 + $0x34] sm:$0xf]
        %v611 = vld [vmem:[#allocation9 + $0x38] sm:$0xf]
        %v612 = vld [vmem:[#allocation9 + $0x3c] sm:$0xf]
        %v613 = vperm.slane %v452, 0
        %v630 = vunpack.c.l.b16 %v597
        %v631 = vunpack.c.l.b16 %v598
        %v632 = vunpack.c.l.b16 %v599
        %v633 = vunpack.c.l.b16 %v600
        %v634 = vunpack.c.l.b16 %v601
        %v635 = vunpack.c.l.b16 %v602
        %v636 = vunpack.c.l.b16 %v603
        %v637 = vunpack.c.l.b16 %v604
        %v638 = vunpack.c.l.b16 %v605
        %v639 = vunpack.c.l.b16 %v606
        %v640 = vunpack.c.l.b16 %v607
        %v641 = vunpack.c.l.b16 %v608
        %v642 = vunpack.c.l.b16 %v609
        %v643 = vunpack.c.l.b16 %v610
        %v644 = vunpack.c.l.b16 %v611
        %v645 = vunpack.c.l.b16 %v612
        %v646 = vpack.c.b16 %v631, %v630
        %v647 = vpack.c.b16 %v633, %v632
        %v648 = vpack.c.b16 %v635, %v634
        %v649 = vpack.c.b16 %v637, %v636
        %v650 = vpack.c.b16 %v639, %v638
        %v651 = vpack.c.b16 %v641, %v640
        %v652 = vpack.c.b16 %v643, %v642
        %v653 = vpack.c.b16 %v645, %v644
        %662 = vmatpush.bf16.msra.mxu0 %v653
        %663 = vmatpush.bf16.msra.mxu0 %v652
        %664 = vmatpush.bf16.msra.mxu0 %v651
        %665 = vmatpush.bf16.msra.mxu0 %v650
        %666 = vmatpush.bf16.msra.mxu0 %v649
        %667 = vmatpush.bf16.msra.mxu0 %v648
        %668 = vmatpush.bf16.msra.mxu0 %v647
        %669 = vmatpush.bf16.msra.mxu0 %v646
        %670 = vmatmul.bf16.gmra.mxu0 %v596
        %v671 = vpop.f32.mrf.mxu0
        %v672 = vadd.f32 %v613, %v671
        %v673 = vpop.f32.mrf.mxu0
        %674 = vdwg.mxu0
        %v675 = vpack.c.bf16 %v672, %v672
        %v676 = vld [vmem:[#allocation2] sm:$0xff]
        %v677 = vld [vmem:[#allocation2 + $0x8] sm:$0xff]
        %v678 = vld [vmem:[%s390] sm:$0x1]
        %v680 = vperm.slane %v678, 0
        %v684 = vunpack.c.l.b16 %v676
        %v685 = vunpack.c.l.b16 %v677
        %v686 = vpack.c.b16 %v685, %v684
        %vm687 = vcmask 261120
        %v689 = vsel %vm687, %v675, 0
        %v692 = vsel %vm687, %v686, 0
        %694 = vmatpush.bf16.xpose.msra.mxu0 0
        %695 = vmatpush.bf16.xpose.msra.mxu0 0
        %696 = vmatpush.bf16.xpose.msra.mxu0 0
        %697 = vmatpush.bf16.xpose.msra.mxu0 0
        %698 = vmatpush.bf16.xpose.msra.mxu0 0
        %699 = vmatpush.bf16.xpose.msra.mxu0 0
        %700 = vmatpush.bf16.xpose.msra.mxu0 0
        %701 = vmatpush.bf16.xpose.msra.mxu0 %v692
        %702 = vmatmul.bf16.gmra.mxu0 %v689
        %v703 = vpop.f32.mrf.mxu0
        %v704 = vadd.f32 %v680, %v703
        %v705 = vpop.f32.mrf.mxu0
        %706 = vdwg.mxu0
        %vm707 = vcmask 130048
        %v708 = vsel %vm707, %v704, -inf
        %709 = vmax.xlane.f32.xlu0 %v708
        %v710 = vpop.xlane.xlu0 %709
        %v711 = vsub.f32 %v704, %v710
        %v712 = vmul.f32 %v711, 1.442695
        %v713 = vpow.pop %v712
        %v714 = vsel %vm707, %v713, 0.0
        %715 = vadd.xlane.f32.xlu0 %v714
        %v716 = vpop.xlane.xlu0 %715
        %v717 = vrcp.pop %v716
        %v718 = vpack.c.bf16 %v713, %v713
        %v719 = vunpack.c.h.b16 %v676
        %v720 = vunpack.c.h.b16 %v677
        %v721 = vpack.c.b16 %v720, %v719
        %v724 = vsel %vm707, %v718, 0
        %726 = vmatpush.bf16.msra.mxu0 0
        %727 = vmatpush.bf16.msra.mxu0 0
        %728 = vmatpush.bf16.msra.mxu0 0
        %729 = vmatpush.bf16.msra.mxu0 0
        %730 = vmatpush.bf16.msra.mxu0 0
        %731 = vmatpush.bf16.msra.mxu0 0
        %732 = vmatpush.bf16.msra.mxu0 0
        %733 = vmatpush.bf16.msra.mxu0 %v721
        %734 = vmatmul.bf16.gmra.mxu0 %v724
        %v735 = vpop.f32.mrf.mxu0
        %v736 = vadd.f32 0.0, %v735
        %v737 = vpop.f32.mrf.mxu0
        %738 = vdwg.mxu0
        %v739 = vmul.f32 %v736, %v717
        %v741 = vunpack.c.l.b16 %v675
        %v742 = vpack.c.b16 %v741, %v741
        %743 = vrot.lane.b32.xlu0 %v742, 96
        %v744 = vpop.permute.xlu0 %743
        %745 = vrot.lane.b32.xlu0 %v686, 96
        %v746 = vpop.permute.xlu0 %745
        %v748 = vsel %vm687, %v744, 0
        %v751 = vsel %vm687, %v746, 0
        %753 = vmatpush.bf16.xpose.msra.mxu0 0
        %754 = vmatpush.bf16.xpose.msra.mxu0 0
        %755 = vmatpush.bf16.xpose.msra.mxu0 0
        %756 = vmatpush.bf16.xpose.msra.mxu0 0
        %757 = vmatpush.bf16.xpose.msra.mxu0 0
        %758 = vmatpush.bf16.xpose.msra.mxu0 0
        %759 = vmatpush.bf16.xpose.msra.mxu0 0
        %760 = vmatpush.bf16.xpose.msra.mxu0 %v751
        %761 = vmatmul.bf16.gmra.mxu0 %v748
        %v762 = vpop.f32.mrf.mxu0
        %v763 = vadd.f32 %v680, %v762
        %v764 = vpop.f32.mrf.mxu0
        %765 = vdwg.mxu0
        %v766 = vsel %vm707, %v763, -inf
        %767 = vmax.xlane.f32.xlu0 %v766
        %v768 = vpop.xlane.xlu0 %767
        %v769 = vsub.f32 %v763, %v768
        %v770 = vmul.f32 %v769, 1.442695
        %v771 = vpow.pop %v770
        %v772 = vsel %vm707, %v771, 0.0
        %773 = vadd.xlane.f32.xlu0 %v772
        %v774 = vpop.xlane.xlu0 %773
        %v775 = vrcp.pop %v774
        %v776 = vpack.c.bf16 %v771, %v771
        %777 = vrot.lane.b32.xlu0 %v721, 96
        %v778 = vpop.permute.xlu0 %777
        %v781 = vsel %vm707, %v776, 0
        %783 = vmatpush.bf16.msra.mxu0 0
        %784 = vmatpush.bf16.msra.mxu0 0
        %785 = vmatpush.bf16.msra.mxu0 0
        %786 = vmatpush.bf16.msra.mxu0 0
        %787 = vmatpush.bf16.msra.mxu0 0
        %788 = vmatpush.bf16.msra.mxu0 0
        %789 = vmatpush.bf16.msra.mxu0 0
        %790 = vmatpush.bf16.msra.mxu0 %v778
        %791 = vmatmul.bf16.gmra.mxu0 %v781
        %v792 = vpop.f32.mrf.mxu0
        %v793 = vadd.f32 0.0, %v792
        %v794 = vpop.f32.mrf.mxu0
        %795 = vdwg.mxu0
        %v796 = vmul.f32 %v793, %v775
        %797 = vrot.lane.b32.xlu0 %v742, 64
        %v798 = vpop.permute.xlu0 %797
        %799 = vrot.lane.b32.xlu0 %v686, 64
        %v800 = vpop.permute.xlu0 %799
        %v802 = vsel %vm687, %v798, 0
        %v805 = vsel %vm687, %v800, 0
        %807 = vmatpush.bf16.xpose.msra.mxu0 0
        %808 = vmatpush.bf16.xpose.msra.mxu0 0
        %809 = vmatpush.bf16.xpose.msra.mxu0 0
        %810 = vmatpush.bf16.xpose.msra.mxu0 0
        %811 = vmatpush.bf16.xpose.msra.mxu0 0
        %812 = vmatpush.bf16.xpose.msra.mxu0 0
        %813 = vmatpush.bf16.xpose.msra.mxu0 0
        %814 = vmatpush.bf16.xpose.msra.mxu0 %v805
        %815 = vmatmul.bf16.gmra.mxu0 %v802
        %v816 = vpop.f32.mrf.mxu0
        %v817 = vadd.f32 %v680, %v816
        %v818 = vpop.f32.mrf.mxu0
        %819 = vdwg.mxu0
        %v820 = vsel %vm707, %v817, -inf
        %821 = vmax.xlane.f32.xlu0 %v820
        %v822 = vpop.xlane.xlu0 %821
        %v823 = vsub.f32 %v817, %v822
        %v824 = vmul.f32 %v823, 1.442695
        %v825 = vpow.pop %v824
        %v826 = vsel %vm707, %v825, 0.0
        %827 = vadd.xlane.f32.xlu0 %v826
        %v828 = vpop.xlane.xlu0 %827
        %v829 = vrcp.pop %v828
        %v830 = vpack.c.bf16 %v825, %v825
        %831 = vrot.lane.b32.xlu0 %v721, 64
        %v832 = vpop.permute.xlu0 %831
        %v835 = vsel %vm707, %v830, 0
        %837 = vmatpush.bf16.msra.mxu0 0
        %838 = vmatpush.bf16.msra.mxu0 0
        %839 = vmatpush.bf16.msra.mxu0 0
        %840 = vmatpush.bf16.msra.mxu0 0
        %841 = vmatpush.bf16.msra.mxu0 0
        %842 = vmatpush.bf16.msra.mxu0 0
        %843 = vmatpush.bf16.msra.mxu0 0
        %844 = vmatpush.bf16.msra.mxu0 %v832
        %845 = vmatmul.bf16.gmra.mxu0 %v835
        %v846 = vpop.f32.mrf.mxu0
        %v847 = vadd.f32 0.0, %v846
        %v848 = vpop.f32.mrf.mxu0
        %849 = vdwg.mxu0
        %v850 = vmul.f32 %v847, %v829
        %851 = vrot.lane.b32.xlu0 %v742, 32
        %v852 = vpop.permute.xlu0 %851
        %853 = vrot.lane.b32.xlu0 %v686, 32
        %v854 = vpop.permute.xlu0 %853
        %v856 = vsel %vm687, %v852, 0
        %v859 = vsel %vm687, %v854, 0
        %861 = vmatpush.bf16.xpose.msra.mxu0 0
        %862 = vmatpush.bf16.xpose.msra.mxu0 0
        %863 = vmatpush.bf16.xpose.msra.mxu0 0
        %864 = vmatpush.bf16.xpose.msra.mxu0 0
        %865 = vmatpush.bf16.xpose.msra.mxu0 0
        %866 = vmatpush.bf16.xpose.msra.mxu0 0
        %867 = vmatpush.bf16.xpose.msra.mxu0 0
        %868 = vmatpush.bf16.xpose.msra.mxu0 %v859
        %869 = vmatmul.bf16.gmra.mxu0 %v856
        %v870 = vpop.f32.mrf.mxu0
        %v871 = vadd.f32 %v680, %v870
        %v872 = vpop.f32.mrf.mxu0
        %873 = vdwg.mxu0
        %v874 = vsel %vm707, %v871, -inf
        %875 = vmax.xlane.f32.xlu0 %v874
        %v876 = vpop.xlane.xlu0 %875
        %v877 = vsub.f32 %v871, %v876
        %v878 = vmul.f32 %v877, 1.442695
        %v879 = vpow.pop %v878
        %v880 = vsel %vm707, %v879, 0.0
        %881 = vadd.xlane.f32.xlu0 %v880
        %v882 = vpop.xlane.xlu0 %881
        %v883 = vrcp.pop %v882
        %v884 = vpack.c.bf16 %v879, %v879
        %885 = vrot.lane.b32.xlu0 %v721, 32
        %v886 = vpop.permute.xlu0 %885
        %v889 = vsel %vm707, %v884, 0
        %891 = vmatpush.bf16.msra.mxu0 0
        %892 = vmatpush.bf16.msra.mxu0 0
        %893 = vmatpush.bf16.msra.mxu0 0
        %894 = vmatpush.bf16.msra.mxu0 0
        %895 = vmatpush.bf16.msra.mxu0 0
        %896 = vmatpush.bf16.msra.mxu0 0
        %897 = vmatpush.bf16.msra.mxu0 0
        %898 = vmatpush.bf16.msra.mxu0 %v886
        %899 = vmatmul.bf16.gmra.mxu0 %v889
        %v900 = vpop.f32.mrf.mxu0
        %v901 = vadd.f32 0.0, %v900
        %v902 = vpop.f32.mrf.mxu0
        %903 = vdwg.mxu0
        %v904 = vmul.f32 %v901, %v883
        %906 = vrot.lane.b32.xlu0 %v796, 32
        %v907 = vpop.permute.xlu0 %906
        %910 = vrot.lane.b32.xlu0 %v850, 64
        %v911 = vpop.permute.xlu0 %910
        %914 = vrot.lane.b32.xlu0 %v904, 96
        %v915 = vpop.permute.xlu0 %914
        %v917 = vsel %vm687, %v739, %v907
        %vm918 = vcmask 523264
        %v919 = vsel %vm918, %v917, %v911
        %vm920 = vcmask 785408
        %v921 = vsel %vm920, %v919, %v915
        %v922 = vpack.c.bf16 %v921, %v921
        %v923 = vld [vmem:[#allocation12] sm:$0xf]
        %v924 = vld [vmem:[#allocation12 + $0x4] sm:$0xf]
        %v925 = vld [vmem:[#allocation12 + $0x8] sm:$0xf]
        %v926 = vld [vmem:[#allocation12 + $0xc] sm:$0xf]
        %v927 = vld [vmem:[#allocation12 + $0x10] sm:$0xf]
        %v928 = vld [vmem:[#allocation12 + $0x14] sm:$0xf]
        %v929 = vld [vmem:[#allocation12 + $0x18] sm:$0xf]
        %v930 = vld [vmem:[#allocation12 + $0x1c] sm:$0xf]
        %v931 = vld [vmem:[#allocation12 + $0x20] sm:$0xf]
        %v932 = vld [vmem:[#allocation12 + $0x24] sm:$0xf]
        %v933 = vld [vmem:[#allocation12 + $0x28] sm:$0xf]
        %v934 = vld [vmem:[#allocation12 + $0x2c] sm:$0xf]
        %v935 = vld [vmem:[#allocation12 + $0x30] sm:$0xf]
        %v936 = vld [vmem:[#allocation12 + $0x34] sm:$0xf]
        %v937 = vld [vmem:[#allocation12 + $0x38] sm:$0xf]
        %v938 = vld [vmem:[#allocation12 + $0x3c] sm:$0xf]
        %v939 = vperm.slane %v455, 0
        %v956 = vunpack.c.l.b16 %v923
        %v957 = vunpack.c.l.b16 %v924
        %v958 = vunpack.c.l.b16 %v925
        %v959 = vunpack.c.l.b16 %v926
        %v960 = vunpack.c.l.b16 %v927
        %v961 = vunpack.c.l.b16 %v928
        %v962 = vunpack.c.l.b16 %v929
        %v963 = vunpack.c.l.b16 %v930
        %v964 = vunpack.c.l.b16 %v931
        %v965 = vunpack.c.l.b16 %v932
        %v966 = vunpack.c.l.b16 %v933
        %v967 = vunpack.c.l.b16 %v934
        %v968 = vunpack.c.l.b16 %v935
        %v969 = vunpack.c.l.b16 %v936
        %v970 = vunpack.c.l.b16 %v937
        %v971 = vunpack.c.l.b16 %v938
        %v972 = vpack.c.b16 %v957, %v956
        %v973 = vpack.c.b16 %v959, %v958
        %v974 = vpack.c.b16 %v961, %v960
        %v975 = vpack.c.b16 %v963, %v962
        %v976 = vpack.c.b16 %v965, %v964
        %v977 = vpack.c.b16 %v967, %v966
        %v978 = vpack.c.b16 %v969, %v968
        %v979 = vpack.c.b16 %v971, %v970
        %988 = vmatpush.bf16.msra.mxu0 %v979
        %989 = vmatpush.bf16.msra.mxu0 %v978
        %990 = vmatpush.bf16.msra.mxu0 %v977
        %991 = vmatpush.bf16.msra.mxu0 %v976
        %992 = vmatpush.bf16.msra.mxu0 %v975
        %993 = vmatpush.bf16.msra.mxu0 %v974
        %994 = vmatpush.bf16.msra.mxu0 %v973
        %995 = vmatpush.bf16.msra.mxu0 %v972
        %996 = vmatmul.bf16.gmra.mxu0 %v922
        %v997 = vpop.f32.mrf.mxu0
        %v998 = vadd.f32 %v939, %v997
        %v999 = vpop.f32.mrf.mxu0
        %1000 = vdwg.mxu0
        %v1001 = vadd.f32 %v998, %v595
        %1002 = vadd.xlane.f32.xlu0 %v1001
        %v1003 = vpop.xlane.xlu0 %1002
        %v1004 = vrcp.pop 128.0
        %v1005 = vmul.f32 128.0, %v1004
        %v1006 = vsub.f32 1.0, %v1005
        %v1007 = vmul.f32 %v1004, %v1006
        %v1008 = vadd.f32 %v1004, %v1007
        %vm1009 = vweird.f32 %v1004
        %v1010 = vsel %vm1009, %v1004, %v1008
        %v1011 = vmul.f32 %v1003, %v1010
        %v1012 = vsub.f32 %v1001, %v1011
        %v1013 = vmul.f32 %v1012, %v1012
        %1014 = vadd.xlane.f32.xlu0 %v1013
        %v1015 = vpop.xlane.xlu0 %1014
        %v1016 = vmul.f32 %v1015, %v1010
        %v1017 = vadd.f32 %v1016, 1e-12
        %v1018 = vrsqrt.pop %v1017
        %v1019 = vmul.f32 %v1018, %v1017
        %v1020 = vmul.f32 %v1019, %v1018
        %v1021 = vmul.f32 0.5, %v1020
        %v1022 = vsub.f32 1.5, %v1021
        %v1023 = vmul.f32 %v1018, %v1022
        %vm1024 = vweird.f32 %v1017
        %vm1025 = vweird.f32 %v1018
        %vm1026 = vmor %vm1024, %vm1025
        %v1027 = vsel %vm1026, %v1018, %v1023
        %v1028 = vmul.f32 %v1012, %v1027
        %v1029 = vperm.slane %v456, 0
        %v1030 = vmul.f32 %v1028, %v1029
        %v1031 = vperm.slane %v457, 0
        %v1032 = vadd.f32 %v1030, %v1031
        %1033 = vst [vmem:[%s450] sm:$0xff] %v1032
        %s1034 = sand.u32 %s215, 1
        %s1035 = scalar_lea.sflag [#allocation5], %s1034
        %s1036 = sand.u32 %s215, 1
        %s1037 = smul.addr %s1036, 8
        %s1038 = scalar_lea.vmem [#allocation15], %s1037
        // Predicated region
        $region81: #{tpu_custom_call.1} parent=47 // pred_check
          %p1039 = pneg %p225
        $region82: #{tpu_custom_call.1} parent=47 // pred_check_branch
          %1041 = sbr.rel (%p1039) target = $region84
        $region83: #{tpu_custom_call.1} parent=47 // pred_region
          %1043 = vsyncadd %s1035, 0
          %s1044 = sadd.s32 %s34, %s33
          %s1045 = smul.addr %s1044, 8
          %s1046 = scalar_lea.hbm %s7, %s1045
          %s1048 = sshll.u32 %s1038, 4
          %s1049 = int_to_ptr.vmem [resolvable:$true] %s1048
          %s1050 = sshll.u32 %s1046, 4
          %s1051 = int_to_ptr.hbm [resolvable:$true] %s1050
          %1053 = dma.vmem_to_hbm [thread:$0]  %s1049, 128, %s1051, %s1035
        $region84: #{tpu_custom_call.1} parent=47 // pred_fallthru
          _
      $region48: #{tpu_custom_call.1} parent=5 // pred_fallthru
        _
      %p1054 = scmp.le.s32.totalorder 2, %s24
      // Predicated region
      $region85: #{tpu_custom_call.1} parent=5 // pred_check
        %p1055 = pneg %p1054
      $region86: #{tpu_custom_call.1} parent=5 // pred_check_branch
        %1057 = sbr.rel (%p1055) target = $region88
      $region87: #{tpu_custom_call.1} parent=5 // pred_region
        %s1058 = ssub.s32 %s24, 2
        // Predicated region
        $region89: #{tpu_custom_call.1} parent=87 // pred_check
          %p1059 = pneg %p231
        $region90: #{tpu_custom_call.1} parent=87 // pred_check_branch
          %1061 = sbr.rel (%p1059) target = $region92
        $region91: #{tpu_custom_call.1} parent=87 // pred_region
          %s1062 = sand.u32 %s216, 1
          %s1063 = scalar_lea.sflag [#allocation5], %s1062
          %s1064 = sand.u32 %s216, 1
          %s1065 = smul.addr %s1064, 8
          %s1066 = scalar_lea.vmem [#allocation15], %s1065
          %1068 = dma.done %s1063, 128
        $region92: #{tpu_custom_call.1} parent=87 // pred_fallthru
          _
      $region88: #{tpu_custom_call.1} parent=5 // pred_fallthru
        _
    $region6: #{tpu_custom_call.1} parent=1 // loop_footer
      %s28 = sadd.s32 1, %s24
    $region7: #{tpu_custom_call.1} parent=1 // loop_footer_branch
      %23 = sbr.rel target = $region3
    $region8: #{tpu_custom_call.1} parent=1 // loop_exit
      _
    %1069 = vsyncpa [#allocation4], 1
    %s1070 = scalar_lea.sflag [#allocation4], 1
    %1071 = vsyncpa %s1070, 1
    %1072 = vsyncpa [#allocation7], 1
    %s1073 = scalar_lea.sflag [#allocation7], 1
    %1074 = vsyncpa %s1073, 1
    %1075 = vsyncpa [#allocation10], 1
    %1076 = vsyncpa [#allocation13], 1
    %1077 = vsyncpa [#allocation5], 1
    %s1078 = scalar_lea.sflag [#allocation5], 1
    %1079 = vsyncpa %s1078, 1

</llo_original>
